<compile_context>
chip_gen: v5e
topology: v5e:2x2
jax: 0.10.0
libtpu: 0.0.40
codegen_flags: <defaults>
</compile_context>

<pallas_src>
import functools

import jax
import jax.numpy as jnp
from jax.experimental import pallas as pl
from jax.experimental.pallas import tpu as pltpu

VMEM_LIMIT = 48 * 1024 * 1024  # < 64 MiB so it is safe on v7x as well


def _round_up(x, m):
    return ((x + m - 1) // m) * m


def _pad_to(x, mult, axis):
    pad = (-x.shape[axis]) % mult
    if pad == 0:
        return x
    widths = [(0, 0)] * x.ndim
    widths[axis] = (0, pad)
    return jnp.pad(x, widths)


def _pick_tk(K):
    """Lane-aligned K tile (multiple of 128, <=512) minimizing zero-padding."""
    kd = _round_up(K, 128)
    if kd <= 512:
        return kd
    best_t, best_pad = 512, _round_up(kd, 512) - kd
    for t in (384, 256):
        pad = _round_up(kd, t) - kd
        if pad < best_pad:
            best_t, best_pad = t, pad
    return best_t


# ---------------------------------------------------------------------------
# Fused (X @ W) * scale + bias [+ ReLU] kernel — bf16 operands, f32 accumulate
# directly into the resident output tile (no scratch).
# ---------------------------------------------------------------------------
def _fused_matmul_kernel(x_ref, w_ref, s_ref, b_ref, o_ref, *, relu):
    k = pl.program_id(2)

    @pl.when(k == 0)
    def _():
        o_ref[...] = jnp.zeros_like(o_ref)

    o_ref[...] += jnp.dot(x_ref[...], w_ref[...],
                          preferred_element_type=jnp.float32)

    @pl.when(k == pl.num_programs(2) - 1)
    def _():
        y = o_ref[...] * s_ref[...] + b_ref[...]
        if relu:
            y = jnp.maximum(y, 0.0)
        o_ref[...] = y


def fused_matmul(x, w, scale, bias, relu):
    """(x @ w) * scale + bias, optional ReLU.  x:(M,K), w:(K,N), scale/bias:(N,)."""
    M, K = x.shape
    K2, N = w.shape
    assert K == K2
    TM = min(256, _round_up(M, 8))
    TN = min(256, _round_up(N, 128))
    TK = _pick_tk(K)

    xp = _pad_to(_pad_to(x.astype(jnp.bfloat16), TM, 0), TK, 1)
    wp = _pad_to(_pad_to(w.astype(jnp.bfloat16), TK, 0), TN, 1)
    sp = _pad_to(scale.reshape(1, -1).astype(jnp.float32), TN, 1)
    bp = _pad_to(bias.reshape(1, -1).astype(jnp.float32), TN, 1)
    Mp, Kp = xp.shape
    Np = wp.shape[1]
    grid = (Mp // TM, Np // TN, Kp // TK)

    out = pl.pallas_call(
        functools.partial(_fused_matmul_kernel, relu=relu),
        out_shape=jax.ShapeDtypeStruct((Mp, Np), jnp.float32),
        grid_spec=pltpu.PrefetchScalarGridSpec(
            num_scalar_prefetch=0,
            grid=grid,
            in_specs=[
                pl.BlockSpec((TM, TK), lambda i, j, k: (i, k)),
                pl.BlockSpec((TK, TN), lambda i, j, k: (k, j)),
                pl.BlockSpec((1, TN), lambda i, j, k: (0, j)),
                pl.BlockSpec((1, TN), lambda i, j, k: (0, j)),
            ],
            out_specs=pl.BlockSpec((TM, TN), lambda i, j, k: (i, j)),
        ),
        compiler_params=pltpu.CompilerParams(
            dimension_semantics=("parallel", "parallel", "arbitrary"),
            vmem_limit_bytes=VMEM_LIMIT),
    )(xp, wp, sp, bp)
    return out[:M, :N]


# ---------------------------------------------------------------------------
# Fused linear tail: flat -> 1024 -> 512 -> 256 -> 2 in ONE pallas_call.
# Streams the big first-layer weight over K; tiny activations stay in VMEM.
# ---------------------------------------------------------------------------
def _linear_tail_kernel(x_ref, w1_ref, b1_ref, w2_ref, b2_ref, w3_ref, b3_ref,
                        w4_ref, b4_ref, o_ref, acc_ref):
    k = pl.program_id(0)

    @pl.when(k == 0)
    def _():
        acc_ref[...] = jnp.zeros_like(acc_ref)

    acc_ref[...] += jnp.dot(x_ref[...], w1_ref[...],
                            preferred_element_type=jnp.float32)

    @pl.when(k == pl.num_programs(0) - 1)
    def _():
        h = jnp.maximum(acc_ref[...] + b1_ref[...], 0.0)        # Linear1 + ReLU
        h = jnp.maximum(
            jnp.dot(h.astype(jnp.bfloat16), w2_ref[...],
                    preferred_element_type=jnp.float32) + b2_ref[...], 0.0)
        h = jnp.maximum(
            jnp.dot(h.astype(jnp.bfloat16), w3_ref[...],
                    preferred_element_type=jnp.float32) + b3_ref[...], 0.0)
        o_ref[...] = jnp.dot(h.astype(jnp.bfloat16), w4_ref[...],
                             preferred_element_type=jnp.float32) + b4_ref[...]


def linear_tail(x_flat, linears):
    """linears: [(w, b)] in PyTorch (out, in) layout; w1 already NHWC-permuted."""
    (w1, b1), (w2, b2), (w3, b3), (w4, b4) = linears
    B, F = x_flat.shape
    H1, H2, H3, H4 = w1.shape[0], w2.shape[0], w3.shape[0], w4.shape[0]
    NOUT = 128  # pad tiny logit dim to one full lane register
    Bp = _round_up(B, 8)
    TK = min(2048, _round_up(F, 128))
    Fp = _round_up(F, TK)

    xp = jnp.pad(x_flat, ((0, Bp - B), (0, Fp - F))).astype(jnp.bfloat16)
    w1p = jnp.pad(w1.T, ((0, Fp - F), (0, 0))).astype(jnp.bfloat16)   # (Fp, 1024)
    w2p = w2.T.astype(jnp.bfloat16)                                   # (1024, 512)
    w3p = w3.T.astype(jnp.bfloat16)                                   # (512, 256)
    w4p = jnp.pad(w4.T, ((0, 0), (0, NOUT - H4))).astype(jnp.bfloat16)  # (256, 128)
    b1p = b1.reshape(1, -1).astype(jnp.float32)
    b2p = b2.reshape(1, -1).astype(jnp.float32)
    b3p = b3.reshape(1, -1).astype(jnp.float32)
    b4p = jnp.pad(b4.reshape(1, -1), ((0, 0), (0, NOUT - H4))).astype(jnp.float32)

    out = pl.pallas_call(
        _linear_tail_kernel,
        out_shape=jax.ShapeDtypeStruct((Bp, NOUT), jnp.float32),
        grid_spec=pltpu.PrefetchScalarGridSpec(
            num_scalar_prefetch=0,
            grid=(Fp // TK,),
            in_specs=[
                pl.BlockSpec((Bp, TK), lambda k: (0, k)),   # x tile
                pl.BlockSpec((TK, H1), lambda k: (k, 0)),   # streamed W1 tile
                pl.BlockSpec((1, H1), lambda k: (0, 0)),
                pl.BlockSpec((H1, H2), lambda k: (0, 0)),   # resident W2
                pl.BlockSpec((1, H2), lambda k: (0, 0)),
                pl.BlockSpec((H2, H3), lambda k: (0, 0)),   # resident W3
                pl.BlockSpec((1, H3), lambda k: (0, 0)),
                pl.BlockSpec((H3, NOUT), lambda k: (0, 0)),  # resident W4 (padded)
                pl.BlockSpec((1, NOUT), lambda k: (0, 0)),
            ],
            out_specs=pl.BlockSpec((Bp, NOUT), lambda k: (0, 0)),
            scratch_shapes=[pltpu.VMEM((Bp, H1), jnp.float32)],
        ),
        compiler_params=pltpu.CompilerParams(
            dimension_semantics=("arbitrary",),
            vmem_limit_bytes=VMEM_LIMIT),
    )(xp, w1p, b1p, w2p, b2p, w3p, b3p, w4p, b4p)
    return out[:B, :H4]


# ---------------------------------------------------------------------------
# Glue: im2col (bf16), conv+BN(+ReLU), maxpool
# ---------------------------------------------------------------------------
def im2col_3x3(x_nhwc, padding):
    x = x_nhwc.astype(jnp.bfloat16)          # halve HBM bytes of the 9x patch buffer
    if padding == "same":
        x = jnp.pad(x, ((0, 0), (1, 1), (1, 1), (0, 0)))
    N, H, W, C = x.shape
    Ho, Wo = H - 2, W - 2
    patches = [x[:, di:di + Ho, dj:dj + Wo, :]
               for di in range(3) for dj in range(3)]
    p = jnp.concatenate(patches, axis=-1)    # (N, Ho, Wo, 9*C), bf16
    return p.reshape(N * Ho * Wo, 9 * C), (N, Ho, Wo)


def conv_bn(x_nhwc, params, padding, relu):
    w, b, gamma, beta, mean, var = params    # w: (Cout, Cin, 3, 3)
    cout, cin = w.shape[0], w.shape[1]
    patches, (N, Ho, Wo) = im2col_3x3(x_nhwc, padding)
    # match patch column order: (di, dj, cin) -> cout
    w_mat = jnp.transpose(w, (2, 3, 1, 0)).reshape(9 * cin, cout)
    eps = 1e-5
    scale = gamma / jnp.sqrt(var + eps)
    shift = (b - mean) * scale + beta
    y = fused_matmul(patches, w_mat, scale, shift, relu)
    return y.reshape(N, Ho, Wo, cout)


def maxpool2x2(x_nhwc):
    N, H, W, C = x_nhwc.shape
    H2, W2 = H // 2, W // 2
    x = x_nhwc[:, :H2 * 2, :W2 * 2, :].reshape(N, H2, 2, W2, 2, C)
    return x.max(axis=(2, 4))


# ---------------------------------------------------------------------------
# Deterministic parameter construction (mirrors nn.Module __init__ shapes)
# ---------------------------------------------------------------------------
CONV_SPECS = [(3, 32), (32, 64), (64, 128), (128, 128),
              (128, 256), (256, 256), (256, 512), (512, 512)]


def make_params(key, H, W):
    convs = []
    for cin, cout in CONV_SPECS:
        key, k1, k2, k3, k4, k5, k6 = jax.random.split(key, 7)
        fan_in = cin * 9
        w = jax.random.normal(k1, (cout, cin, 3, 3), jnp.float32) * jnp.sqrt(2.0 / fan_in)
        b = 0.01 * jax.random.normal(k2, (cout,), jnp.float32)
        gamma = 1.0 + 0.1 * jax.random.normal(k3, (cout,), jnp.float32)
        beta = 0.1 * jax.random.normal(k4, (cout,), jnp.float32)
        mean = 0.1 * jax.random.normal(k5, (cout,), jnp.float32)
        var = jax.random.uniform(k6, (cout,), jnp.float32, 0.5, 1.5)
        convs.append((w, b, gamma, beta, mean, var))

    Hf, Wf, C = (H - 2) // 8, (W - 2) // 8, 512
    flat = C * Hf * Wf                        # flatten size implied by forward
    lin_specs = [(flat, 1024), (1024, 512), (512, 256), (256, 2)]
    linears = []
    for fin, fout in lin_specs:
        key, k1, k2 = jax.random.split(key, 3)
        w = jax.random.normal(k1, (fout, fin), jnp.float32) * jnp.sqrt(2.0 / fin)
        b = 0.01 * jax.random.normal(k2, (fout,), jnp.float32)
        linears.append((w, b))

    # One-time column permutation of the first Linear so that flattening the NHWC
    # activation directly is equivalent to PyTorch's NCHW Flatten + Linear.
    w1, b1 = linears[0]
    idx = jnp.arange(flat)
    c = idx % C
    hw = idx // C
    h = hw // Wf
    ww = hw % Wf
    nchw_cols = c * (Hf * Wf) + h * Wf + ww
    linears[0] = (w1[:, nchw_cols], b1)
    return {"convs": convs, "linears": linears}


# ---------------------------------------------------------------------------
# Forward pass (matches the nn.Sequential exactly, eval mode)
# ---------------------------------------------------------------------------
def forward(x_nchw, params):
    x = jnp.transpose(x_nchw, (0, 2, 3, 1))         # NCHW -> NHWC
    c = params["convs"]
    x = conv_bn(x, c[0], "same", True)              # Conv(3,32)+BN+ReLU
    x = conv_bn(x, c[1], "valid", True)             # Conv(32,64)+BN+ReLU
    x = maxpool2x2(x)                               # MaxPool; Dropout2d = identity
    x = conv_bn(x, c[2], "same", True)              # Conv(64,128)+BN+ReLU
    x = conv_bn(x, c[3], "same", True)              # Conv(128,128)+BN+ReLU
    x = maxpool2x2(x)                               # MaxPool; Dropout2d = identity
    x = conv_bn(x, c[4], "same", True)              # Conv(128,256)+BN+ReLU
    x = conv_bn(x, c[5], "same", False)             # Conv(256,256)+BN (no ReLU)
    x = maxpool2x2(x)                               # MaxPool
    x = conv_bn(x, c[6], "same", True)              # Conv(256,512)+BN+ReLU
    x = conv_bn(x, c[7], "same", False)             # Conv(512,512)+BN (no ReLU)
    x = x.reshape(x.shape[0], -1)                   # NHWC flatten (w1 pre-permuted)
    # Fused Linear->ReLU->Linear->ReLU->Linear->ReLU->Linear (Dropouts = identity)
    return linear_tail(x, params["linears"])


if __name__ == "__main__":
    B, C, H, W = 2, 3, 34, 34                       # small shape; flatten = 512*4*4
    key = jax.random.PRNGKey(0)
    key_x, key_p = jax.random.split(key)
    x = jax.random.normal(key_x, (B, C, H, W), jnp.float32)
    params = make_params(key_p, H, W)

    logits = forward(x, params)
    logits = jax.block_until_ready(logits)
    assert logits.shape == (B, 2), logits.shape
    assert jnp.all(jnp.isfinite(logits))
    print("KERNEL_OK")
</pallas_src>

<mosaic_0001>
module attributes {stable_mosaic.version = 11 : i64} {
  func.func @_fused_matmul_kernel(%arg0: i32, %arg1: i32, %arg2: i32, %arg3: memref<256x128xbf16, #tpu.memory_space<vmem>>, %arg4: memref<128x128xbf16, #tpu.memory_space<vmem>>, %arg5: memref<1x128xf32, #tpu.memory_space<vmem>>, %arg6: memref<1x128xf32, #tpu.memory_space<vmem>>, %arg7: memref<256x128xf32, #tpu.memory_space<vmem>>) attributes {dimension_semantics = [#tpu.dimension_semantics<parallel>, #tpu.dimension_semantics<parallel>, #tpu.dimension_semantics<arbitrary>], iteration_bounds = array<i64: 10, 1, 1>, scalar_prefetch = 0 : i64, scratch_operands = 0 : i64, tpu.core_type = #tpu.core_type<tc>, window_params = [{transform_indices = @transform_0, window_bounds = array<i64: 256, 128>}, {transform_indices = @transform_1, window_bounds = array<i64: 128, 128>}, {transform_indices = @transform_2, window_bounds = array<i64: 1, 128>}, {transform_indices = @transform_3, window_bounds = array<i64: 1, 128>}, {transform_indices = @transform_4, window_bounds = array<i64: 256, 128>}]} {
    %c0_i32 = arith.constant 0 : i32
    %0 = arith.cmpi eq, %arg2, %c0_i32 : i32
    %1 = arith.extui %0 : i1 to i32
    %c0_i32_0 = arith.constant 0 : i32
    %2 = arith.cmpi ne, %1, %c0_i32_0 : i32
    scf.if %2 {
      %cst_10 = arith.constant 0.000000e+00 : f32
      %12 = vector.broadcast %cst_10 : f32 to vector<256x128xf32>
      %c0_11 = arith.constant 0 : index
      %c0_12 = arith.constant 0 : index
      %13 = vector.load %arg7[%c0_11, %c0_12] : memref<256x128xf32, #tpu.memory_space<vmem>>, vector<256x128xf32>
      tpu.vector_store %arg7[%c0_11, %c0_12], %12 {strides = array<i32>} : memref<256x128xf32, #tpu.memory_space<vmem>>, vector<256x128xf32>,
    } else {
    }
    %c0 = arith.constant 0 : index
    %c0_1 = arith.constant 0 : index
    %3 = vector.load %arg7[%c0, %c0_1] : memref<256x128xf32, #tpu.memory_space<vmem>>, vector<256x128xf32>
    %c0_2 = arith.constant 0 : index
    %c0_3 = arith.constant 0 : index
    %4 = vector.load %arg3[%c0_2, %c0_3] : memref<256x128xbf16, #tpu.memory_space<vmem>>, vector<256x128xbf16>
    %c0_4 = arith.constant 0 : index
    %c0_5 = arith.constant 0 : index
    %5 = vector.load %arg4[%c0_4, %c0_5] : memref<128x128xbf16, #tpu.memory_space<vmem>>, vector<128x128xbf16>
    %cst = arith.constant dense<0.000000e+00> : vector<256x128xf32>
    %6 = tpu.matmul %4, %5, %cst {dimension_numbers = #tpu.dot_dimension_numbers<[1], [0], [0], [1], [0, 0, 1, 1], [], []>} : vector<256x128xbf16>, vector<128x128xbf16>, vector<256x128xf32> -> vector<256x128xf32>
    %7 = arith.addf %3, %6 : vector<256x128xf32>
    %c0_6 = arith.constant 0 : index
    %c0_7 = arith.constant 0 : index
    %8 = vector.load %arg7[%c0_6, %c0_7] : memref<256x128xf32, #tpu.memory_space<vmem>>, vector<256x128xf32>
    tpu.vector_store %arg7[%c0_6, %c0_7], %7 {strides = array<i32>} : memref<256x128xf32, #tpu.memory_space<vmem>>, vector<256x128xf32>,
    %c0_i32_8 = arith.constant 0 : i32
    %9 = arith.cmpi eq, %arg2, %c0_i32_8 : i32
    %10 = arith.extui %9 : i1 to i32
    %c0_i32_9 = arith.constant 0 : i32
    %11 = arith.cmpi ne, %10, %c0_i32_9 : i32
    scf.if %11 {
      %c0_10 = arith.constant 0 : index
      %c0_11 = arith.constant 0 : index
      %12 = vector.load %arg7[%c0_10, %c0_11] : memref<256x128xf32, #tpu.memory_space<vmem>>, vector<256x128xf32>
      %c0_12 = arith.constant 0 : index
      %c0_13 = arith.constant 0 : index
      %13 = vector.load %arg5[%c0_12, %c0_13] : memref<1x128xf32, #tpu.memory_space<vmem>>, vector<1x128xf32>
      %14 = vector.broadcast %13 : vector<1x128xf32> to vector<256x128xf32>
      %15 = arith.mulf %12, %14 : vector<256x128xf32>
      %c0_14 = arith.constant 0 : index
      %c0_15 = arith.constant 0 : index
      %16 = vector.load %arg6[%c0_14, %c0_15] : memref<1x128xf32, #tpu.memory_space<vmem>>, vector<1x128xf32>
      %17 = vector.broadcast %16 : vector<1x128xf32> to vector<256x128xf32>
      %18 = arith.addf %15, %17 : vector<256x128xf32>
      %cst_16 = arith.constant 0.000000e+00 : f32
      %19 = vector.broadcast %cst_16 : f32 to vector<256x128xf32>
      %20 = arith.maximumf %18, %19 : vector<256x128xf32>
      %c0_17 = arith.constant 0 : index
      %c0_18 = arith.constant 0 : index
      %21 = vector.load %arg7[%c0_17, %c0_18] : memref<256x128xf32, #tpu.memory_space<vmem>>, vector<256x128xf32>
      tpu.vector_store %arg7[%c0_17, %c0_18], %20 {strides = array<i32>} : memref<256x128xf32, #tpu.memory_space<vmem>>, vector<256x128xf32>,
    } else {
    }
    return
  }
  func.func @transform_0(%arg0: i32, %arg1: i32, %arg2: i32) -> (i32, i32) {
    %c0_i32 = arith.constant 0 : i32
    return %arg0, %arg2 : i32, i32
  }
  func.func @transform_1(%arg0: i32, %arg1: i32, %arg2: i32) -> (i32, i32) {
    %c0_i32 = arith.constant 0 : i32
    return %arg2, %arg1 : i32, i32
  }
  func.func @transform_2(%arg0: i32, %arg1: i32, %arg2: i32) -> (i32, i32) {
    %c0_i32 = arith.constant 0 : i32
    %c0_i32_0 = arith.constant 0 : i32
    return %c0_i32, %arg1 : i32, i32
  }
  func.func @transform_3(%arg0: i32, %arg1: i32, %arg2: i32) -> (i32, i32) {
    %c0_i32 = arith.constant 0 : i32
    %c0_i32_0 = arith.constant 0 : i32
    return %c0_i32, %arg1 : i32, i32
  }
  func.func @transform_4(%arg0: i32, %arg1: i32, %arg2: i32) -> (i32, i32) {
    %c0_i32 = arith.constant 0 : i32
    return %arg0, %arg1 : i32, i32
  }
}

</mosaic_0001>

<llo_original>
// kernel: tpu_custom_call.1
$region0: #{tpu_custom_call.1}
  #allocation0 [shape = 'u32[]', space=smem, size = 0x4, offset = 0x4, fixed_abs, tag = 'smem constant byte address 0x4 - core index']
  #allocation1 [shape = 'u32[72,128]{1,0:T(1,128)}', space=vmem, size = 0x9000, scoped, tag = 'internal scratch']
  %s0 = inlined_call_operand.hbm [shape: bf16[2560,128], index: 0, kind: input, shape index: {}]
  %s1 = inlined_call_operand.hbm [shape: bf16[128,128], index: 1, kind: input, shape index: {}]
  %s2 = inlined_call_operand.hbm [shape: f32[1,128], index: 2, kind: input, shape index: {}]
  %s3 = inlined_call_operand.hbm [shape: f32[1,128], index: 3, kind: input, shape index: {}]
  %s4 = inlined_call_operand.hbm [shape: f32[2560,128], index: 4, kind: output, shape index: {}]
  %s5 = sld [smem:[#allocation0]]
  $region73: #{tpu_custom_call.1} parent=0
    _
  %s7 = ssub.s32 1, %s5
  %s8 = scalar_select 0, %s7, %s5
  $region1: #{tpu_custom_call.1} parent=0
    #allocation2 [shape = 'u8[131072]{0}', space=vmem, size = 0x20000, scoped, tag = 'input window, operand 0']
    #allocation3 [shape = 's32[2]{0}', space=sflag, size = 0x8, scoped, tag = 'scoped memory for tpu_custom_call.1']
    #allocation4 [shape = 's32[2]{0}', space=sflag, size = 0x8, scoped, tag = 'scoped memory for tpu_custom_call.1']
    #allocation5 [shape = 'u8[32768]{0}', space=vmem, size = 0x8000, scoped, tag = 'input window, operand 1, single buffered']
    #allocation6 [shape = 's32[1]{0}', space=sflag, size = 0x4, scoped, tag = 'scoped memory for tpu_custom_call.1']
    #allocation7 [shape = 'u8[512]{0}', space=vmem, size = 0x400, scoped, tag = 'input window, operand 2, single buffered']
    #allocation8 [shape = 'u8[512]{0}', space=vmem, size = 0x400, scoped, tag = 'input window, operand 3, single buffered']
    #allocation9 [shape = 's32[1]{0}', space=sflag, size = 0x4, scoped, tag = 'scoped memory for tpu_custom_call.1']
    #allocation10 [shape = 'u8[262144]{0}', space=vmem, size = 0x40000, scoped, tag = 'output window, operand 0']
    %9 = vsyncpa [#allocation3], 0
    %s10 = scalar_lea.sflag [#allocation3], 1
    %11 = vsyncpa %s10, 0
    %12 = vsyncpa [#allocation6], 0
    %13 = vsyncpa [#allocation9], 0
    %14 = vsyncpa [#allocation4], 0
    %s15 = scalar_lea.sflag [#allocation4], 1
    %16 = vsyncpa %s15, 0
    loop: start=0, step=1, limit=12
    $region2: #{tpu_custom_call.1} parent=1 // loop_pre_header
      _
    $region3: #{tpu_custom_call.1} parent=1 // loop_header
      %s18 = sphi 0, %s22
      %p19 = scmp.ge.s32.totalorder %s18, 12
      %s25 = sphi 0, %s44
      %s26 = sphi 0, %s40
      %s27 = sphi 0, %s36
      %s28 = sphi 0, %s25
      %s29 = sphi 0, %s26
      %s30 = sphi 0, %s27
      %s31 = sphi 0, %s28
      %s32 = sphi 0, %s29
      %s33 = sphi 0, %s30
      %s49 = sphi 0, %s51
      %s52 = sphi 0, %s49
      %s53 = sphi 0, %s52
      %s69 = sphi 0, %s53
      %s77 = sphi 0, %s79
      %s80 = sphi 0, %s77
      %s81 = sphi 0, %s80
      %s97 = sphi 0, %s81
      %s103 = sphi 0, %s105
      %s106 = sphi 0, %s103
      %s107 = sphi 0, %s106
      %s123 = sphi 0, %s107
      %s129 = sphi 0, %s131
      %s132 = sphi 0, %s129
      %s133 = sphi 0, %s132
      %s149 = sphi 0, %s133
      %s157 = sphi 0, %s159
      %s160 = sphi 0, %s157
      %s161 = sphi 0, %s160
      %s177 = sphi 0, %s161
    $region4: #{tpu_custom_call.1} parent=1 // loop_header_branch
      %21 = sbr.rel (%p19) target = $region8
    $region5: #{tpu_custom_call.1} parent=1 // loop_body
      %s23 = ssub.s32 %s18, 1
      %s24 = ssub.s32 %s18, 2
      %s34 = sadd.s32 1, %s27
      %p35 = scmp.ge.s32.totalorder %s34, 1
      %s36 = scalar_select %p35, 0, %s34
      %s37 = sadd.s32 1, %s26
      %s38 = scalar_select %p35, %s37, %s26
      %p39 = scmp.ge.s32.totalorder %s38, 1
      %s40 = scalar_select %p39, 0, %s38
      %s41 = sadd.s32 1, %s25
      %s42 = scalar_select %p39, %s41, %s25
      %p43 = scmp.ge.s32.totalorder %s42, 10
      %s44 = scalar_select %p43, 0, %s42
      %s45 = ssub.s32 %s25, %s44
      %s46 = ssub.s32 %s27, %s36
      %s47 = sor.u32 %s45, %s46
      %p48 = scmp.eq.s32.totalorder %s47, 0
      %s50 = sadd.s32 %s49, 1
      %s51 = scalar_select %p48, %s49, %s50
      %p54 = pneg %p48
      %p55 = scmp.eq.s32.totalorder %s18, 9
      %p56 = por %p54, %p55
      %p57 = scmp.ne.s32.totalorder %s49, %s52
      %p58 = scmp.eq.s32.totalorder %s18, 0
      %p59 = por %p57, %p58
      %p60 = scmp.ne.s32.totalorder %s49, %s52
      %p61 = scmp.eq.s32.totalorder %s23, 9
      %p62 = por %p60, %p61
      %p63 = scmp.ne.s32.totalorder %s52, %s53
      %p64 = scmp.eq.s32.totalorder %s23, 0
      %p65 = por %p63, %p64
      %p66 = scmp.ne.s32.totalorder %s52, %s53
      %p67 = scmp.eq.s32.totalorder %s24, 9
      %p68 = por %p66, %p67
      %p70 = scmp.ne.s32.totalorder %s53, %s69
      %p71 = scmp.eq.s32.totalorder %s24, 0
      %p72 = por %p70, %p71
      %s73 = ssub.s32 %s27, %s36
      %s74 = ssub.s32 %s26, %s40
      %s75 = sor.u32 %s73, %s74
      %p76 = scmp.eq.s32.totalorder %s75, 0
      %s78 = sadd.s32 %s77, 1
      %s79 = scalar_select %p76, %s77, %s78
      %p82 = pneg %p76
      %p83 = scmp.eq.s32.totalorder %s18, 9
      %p84 = por %p82, %p83
      %p85 = scmp.ne.s32.totalorder %s77, %s80
      %p86 = scmp.eq.s32.totalorder %s18, 0
      %p87 = por %p85, %p86
      %p88 = scmp.ne.s32.totalorder %s77, %s80
      %p89 = scmp.eq.s32.totalorder %s23, 9
      %p90 = por %p88, %p89
      %p91 = scmp.ne.s32.totalorder %s80, %s81
      %p92 = scmp.eq.s32.totalorder %s23, 0
      %p93 = por %p91, %p92
      %p94 = scmp.ne.s32.totalorder %s80, %s81
      %p95 = scmp.eq.s32.totalorder %s24, 9
      %p96 = por %p94, %p95
      %p98 = scmp.ne.s32.totalorder %s81, %s97
      %p99 = scmp.eq.s32.totalorder %s24, 0
      %p100 = por %p98, %p99
      %s101 = ssub.s32 %s26, %s40
      %p102 = scmp.eq.s32.totalorder %s101, 0
      %s104 = sadd.s32 %s103, 1
      %s105 = scalar_select %p102, %s103, %s104
      %p108 = pneg %p102
      %p109 = scmp.eq.s32.totalorder %s18, 9
      %p110 = por %p108, %p109
      %p111 = scmp.ne.s32.totalorder %s103, %s106
      %p112 = scmp.eq.s32.totalorder %s18, 0
      %p113 = por %p111, %p112
      %p114 = scmp.ne.s32.totalorder %s103, %s106
      %p115 = scmp.eq.s32.totalorder %s23, 9
      %p116 = por %p114, %p115
      %p117 = scmp.ne.s32.totalorder %s106, %s107
      %p118 = scmp.eq.s32.totalorder %s23, 0
      %p119 = por %p117, %p118
      %p120 = scmp.ne.s32.totalorder %s106, %s107
      %p121 = scmp.eq.s32.totalorder %s24, 9
      %p122 = por %p120, %p121
      %p124 = scmp.ne.s32.totalorder %s107, %s123
      %p125 = scmp.eq.s32.totalorder %s24, 0
      %p126 = por %p124, %p125
      %s127 = ssub.s32 %s26, %s40
      %p128 = scmp.eq.s32.totalorder %s127, 0
      %s130 = sadd.s32 %s129, 1
      %s131 = scalar_select %p128, %s129, %s130
      %p134 = pneg %p128
      %p135 = scmp.eq.s32.totalorder %s18, 9
      %p136 = por %p134, %p135
      %p137 = scmp.ne.s32.totalorder %s129, %s132
      %p138 = scmp.eq.s32.totalorder %s18, 0
      %p139 = por %p137, %p138
      %p140 = scmp.ne.s32.totalorder %s129, %s132
      %p141 = scmp.eq.s32.totalorder %s23, 9
      %p142 = por %p140, %p141
      %p143 = scmp.ne.s32.totalorder %s132, %s133
      %p144 = scmp.eq.s32.totalorder %s23, 0
      %p145 = por %p143, %p144
      %p146 = scmp.ne.s32.totalorder %s132, %s133
      %p147 = scmp.eq.s32.totalorder %s24, 9
      %p148 = por %p146, %p147
      %p150 = scmp.ne.s32.totalorder %s133, %s149
      %p151 = scmp.eq.s32.totalorder %s24, 0
      %p152 = por %p150, %p151
      %s153 = ssub.s32 %s25, %s44
      %s154 = ssub.s32 %s26, %s40
      %s155 = sor.u32 %s153, %s154
      %p156 = scmp.eq.s32.totalorder %s155, 0
      %s158 = sadd.s32 %s157, 1
      %s159 = scalar_select %p156, %s157, %s158
      %p162 = pneg %p156
      %p163 = scmp.eq.s32.totalorder %s18, 9
      %p164 = por %p162, %p163
      %p165 = scmp.ne.s32.totalorder %s157, %s160
      %p166 = scmp.eq.s32.totalorder %s18, 0
      %p167 = por %p165, %p166
      %p168 = scmp.ne.s32.totalorder %s157, %s160
      %p169 = scmp.eq.s32.totalorder %s23, 9
      %p170 = por %p168, %p169
      %p171 = scmp.ne.s32.totalorder %s160, %s161
      %p172 = scmp.eq.s32.totalorder %s23, 0
      %p173 = por %p171, %p172
      %p174 = scmp.ne.s32.totalorder %s160, %s161
      %p175 = scmp.eq.s32.totalorder %s24, 9
      %p176 = por %p174, %p175
      %p178 = scmp.ne.s32.totalorder %s161, %s177
      %p179 = scmp.eq.s32.totalorder %s24, 0
      %p180 = por %p178, %p179
      %p181 = scmp.le.s32.totalorder 1, %s18
      %p182 = scmp.lt.s32.totalorder %s18, 11
      %p183 = pnand %p181, %p182
      %p184 = pneg %p183
      // Predicated region
      $region9: #{tpu_custom_call.1} parent=5 // pred_check
        _
      $region10: #{tpu_custom_call.1} parent=5 // pred_check_branch
        %186 = sbr.rel (%p183) target = $region12
      $region11: #{tpu_custom_call.1} parent=5 // pred_region
        %s187 = ssub.s32 %s18, 1
        // Predicated region
        $region13: #{tpu_custom_call.1} parent=11 // pred_check
          %p188 = pneg %p93
        $region14: #{tpu_custom_call.1} parent=11 // pred_check_branch
          %190 = sbr.rel (%p188) target = $region16
        $region15: #{tpu_custom_call.1} parent=11 // pred_region
          %s191 = smul.u32 16, %s30
          %193 = vsyncadd [#allocation6], 0
          %s194 = sadd.s32 %s29, %s191
          %s195 = smul.addr %s194, 4
          %s196 = scalar_lea.hbm %s1, %s195
          %s197 = sshll.u32 %s196, 4
          %s198 = int_to_ptr.hbm [resolvable:$true] %s197
          %s199 = sshll.u32 [#allocation5], 4
          %s200 = int_to_ptr.vmem [resolvable:$true] %s199
          %205 = dma.hbm_to_vmem [thread:$0]  %s198, 1024, %s200, [#allocation6], 64, 64, 4
        $region16: #{tpu_custom_call.1} parent=11 // pred_fallthru
          _
        // Predicated region
        $region17: #{tpu_custom_call.1} parent=11 // pred_check
          %p206 = pneg %p119
        $region18: #{tpu_custom_call.1} parent=11 // pred_check_branch
          %208 = sbr.rel (%p206) target = $region20
        $region19: #{tpu_custom_call.1} parent=11 // pred_region
          %210 = vsyncadd [#allocation6], 0
          %s211 = scalar_lea.hbm %s2, %s29
          %s213 = sshll.u32 %s211, 4
          %s214 = int_to_ptr.hbm [resolvable:$true] %s213
          %s215 = sshll.u32 [#allocation7], 4
          %s216 = int_to_ptr.vmem [resolvable:$true] %s215
          %218 = dma.hbm_to_vmem [thread:$0]  %s214, 16, %s216, [#allocation6]
        $region20: #{tpu_custom_call.1} parent=11 // pred_fallthru
          _
        // Predicated region
        $region21: #{tpu_custom_call.1} parent=11 // pred_check
          %p219 = pneg %p145
        $region22: #{tpu_custom_call.1} parent=11 // pred_check_branch
          %221 = sbr.rel (%p219) target = $region24
        $region23: #{tpu_custom_call.1} parent=11 // pred_region
          %223 = vsyncadd [#allocation9], 0
          %s224 = scalar_lea.hbm %s3, %s29
          %s226 = sshll.u32 %s224, 4
          %s227 = int_to_ptr.hbm [resolvable:$true] %s226
          %s228 = sshll.u32 [#allocation8], 4
          %s229 = int_to_ptr.vmem [resolvable:$true] %s228
          %231 = dma.hbm_to_vmem [thread:$0]  %s227, 16, %s229, [#allocation9]
        $region24: #{tpu_custom_call.1} parent=11 // pred_fallthru
          _
      $region12: #{tpu_custom_call.1} parent=5 // pred_fallthru
        _
      %p232 = scmp.lt.s32.totalorder %s18, 10
      // Predicated region
      $region25: #{tpu_custom_call.1} parent=5 // pred_check
        %p233 = pneg %p232
      $region26: #{tpu_custom_call.1} parent=5 // pred_check_branch
        %235 = sbr.rel (%p233) target = $region28
      $region27: #{tpu_custom_call.1} parent=5 // pred_region
        // Predicated region
        $region29: #{tpu_custom_call.1} parent=27 // pred_check
          %p236 = pneg %p59
        $region30: #{tpu_custom_call.1} parent=27 // pred_check_branch
          %238 = sbr.rel (%p236) target = $region32
        $region31: #{tpu_custom_call.1} parent=27 // pred_region
          %s239 = sand.u32 %s49, 1
          %s240 = scalar_lea.sflag [#allocation3], %s239
          %s241 = sand.u32 %s49, 1
          %s242 = smul.addr %s241, 128
          %s243 = scalar_lea.vmem [#allocation2], %s242
          %s244 = smul.u32 32, %s25
          %246 = vsyncadd %s240, 0
          %s247 = sadd.s32 %s27, %s244
          %s248 = smul.addr %s247, 4
          %s249 = scalar_lea.hbm %s0, %s248
          %s250 = sshll.u32 %s249, 4
          %s251 = int_to_ptr.hbm [resolvable:$true] %s250
          %s252 = sshll.u32 %s243, 4
          %s253 = int_to_ptr.vmem [resolvable:$true] %s252
          %258 = dma.hbm_to_vmem [thread:$0]  %s251, 2048, %s253, %s240, 64, 64, 4
        $region32: #{tpu_custom_call.1} parent=27 // pred_fallthru
          _
      $region28: #{tpu_custom_call.1} parent=5 // pred_fallthru
        _
      %p259 = scmp.le.s32.totalorder 1, %s18
      %p260 = scmp.lt.s32.totalorder %s18, 11
      %p261 = pnand %p259, %p260
      %p262 = pneg %p261
      // Predicated region
      $region33: #{tpu_custom_call.1} parent=5 // pred_check
        _
      $region34: #{tpu_custom_call.1} parent=5 // pred_check_branch
        %264 = sbr.rel (%p261) target = $region36
      $region35: #{tpu_custom_call.1} parent=5 // pred_region
        %s265 = ssub.s32 %s18, 1
        %s266 = sand.u32 %s52, 1
        %s267 = scalar_lea.sflag [#allocation3], %s266
        %s268 = sand.u32 %s52, 1
        %s269 = smul.addr %s268, 128
        %s270 = scalar_lea.vmem [#allocation2], %s269
        // Predicated region
        $region37: #{tpu_custom_call.1} parent=35 // pred_check
          %p271 = pneg %p65
        $region38: #{tpu_custom_call.1} parent=35 // pred_check_branch
          %273 = sbr.rel (%p271) target = $region40
        $region39: #{tpu_custom_call.1} parent=35 // pred_region
          %275 = dma.done %s267, 2048
        $region40: #{tpu_custom_call.1} parent=35 // pred_fallthru
          _
        // Predicated region
        $region41: #{tpu_custom_call.1} parent=35 // pred_check
          %p276 = pneg %p93
        $region42: #{tpu_custom_call.1} parent=35 // pred_check_branch
          %278 = sbr.rel (%p276) target = $region44
        $region43: #{tpu_custom_call.1} parent=35 // pred_region
          %280 = dma.done [#allocation6], 1024
        $region44: #{tpu_custom_call.1} parent=35 // pred_fallthru
          _
        // Predicated region
        $region45: #{tpu_custom_call.1} parent=35 // pred_check
          %p281 = pneg %p119
        $region46: #{tpu_custom_call.1} parent=35 // pred_check_branch
          %283 = sbr.rel (%p281) target = $region48
        $region47: #{tpu_custom_call.1} parent=35 // pred_region
          %285 = dma.done [#allocation6], 16
        $region48: #{tpu_custom_call.1} parent=35 // pred_fallthru
          _
        // Predicated region
        $region49: #{tpu_custom_call.1} parent=35 // pred_check
          %p286 = pneg %p145
        $region50: #{tpu_custom_call.1} parent=35 // pred_check_branch
          %288 = sbr.rel (%p286) target = $region52
        $region51: #{tpu_custom_call.1} parent=35 // pred_region
          %290 = dma.done [#allocation9], 16
        $region52: #{tpu_custom_call.1} parent=35 // pred_fallthru
          _
        %s291 = sand.u32 %s52, 1
        %s292 = scalar_lea.sflag [#allocation3], %s291
        %s293 = sand.u32 %s52, 1
        %s294 = smul.addr %s293, 128
        %s295 = scalar_lea.vmem [#allocation2], %s294
        %p296 = pneg %p65
        %p297 = pneg %p62
        %p298 = pneg %p93
        %p299 = pneg %p90
        %p300 = pneg %p119
        %p301 = pneg %p116
        %p302 = pneg %p145
        %p303 = pneg %p142
        %p304 = pneg %p173
        %p305 = pneg %p170
        %s306 = sand.u32 %s160, 1
        %s307 = scalar_lea.sflag [#allocation4], %s306
        %s308 = sand.u32 %s160, 1
        %s309 = smul.addr %s308, 256
        %s310 = scalar_lea.vmem [#allocation10], %s309
        %s311 = smul.u32 32, %s28
        %s312 = smul.u32 16, %s30
        %s313 = smul.u32 32, %s28
        %p314 = scmp.eq.s32.totalorder %s30, 0
        // Predicated region
        $region53: #{tpu_custom_call.1} parent=35 // pred_check
          %p315 = pneg %p314
        $region54: #{tpu_custom_call.1} parent=35 // pred_check_branch
          %317 = sbr.rel (%p315) target = $region56
        $region55: #{tpu_custom_call.1} parent=35 // pred_region
          %318 = vst [vmem:[%s310] sm:$0xff] 0.0
          %319 = vst [vmem:[%s310 + $0x8] sm:$0xff] 0.0
          %320 = vst [vmem:[%s310 + $0x10] sm:$0xff] 0.0
          %321 = vst [vmem:[%s310 + $0x18] sm:$0xff] 0.0
          %322 = vst [vmem:[%s310 + $0x20] sm:$0xff] 0.0
          %323 = vst [vmem:[%s310 + $0x28] sm:$0xff] 0.0
          %324 = vst [vmem:[%s310 + $0x30] sm:$0xff] 0.0
          %325 = vst [vmem:[%s310 + $0x38] sm:$0xff] 0.0
          %326 = vst [vmem:[%s310 + $0x40] sm:$0xff] 0.0
          %327 = vst [vmem:[%s310 + $0x48] sm:$0xff] 0.0
          %328 = vst [vmem:[%s310 + $0x50] sm:$0xff] 0.0
          %329 = vst [vmem:[%s310 + $0x58] sm:$0xff] 0.0
          %330 = vst [vmem:[%s310 + $0x60] sm:$0xff] 0.0
          %331 = vst [vmem:[%s310 + $0x68] sm:$0xff] 0.0
          %332 = vst [vmem:[%s310 + $0x70] sm:$0xff] 0.0
          %333 = vst [vmem:[%s310 + $0x78] sm:$0xff] 0.0
          %334 = vst [vmem:[%s310 + $0x80] sm:$0xff] 0.0
          %335 = vst [vmem:[%s310 + $0x88] sm:$0xff] 0.0
          %336 = vst [vmem:[%s310 + $0x90] sm:$0xff] 0.0
          %337 = vst [vmem:[%s310 + $0x98] sm:$0xff] 0.0
          %338 = vst [vmem:[%s310 + $0xa0] sm:$0xff] 0.0
          %339 = vst [vmem:[%s310 + $0xa8] sm:$0xff] 0.0
          %340 = vst [vmem:[%s310 + $0xb0] sm:$0xff] 0.0
          %341 = vst [vmem:[%s310 + $0xb8] sm:$0xff] 0.0
          %342 = vst [vmem:[%s310 + $0xc0] sm:$0xff] 0.0
          %343 = vst [vmem:[%s310 + $0xc8] sm:$0xff] 0.0
          %344 = vst [vmem:[%s310 + $0xd0] sm:$0xff] 0.0
          %345 = vst [vmem:[%s310 + $0xd8] sm:$0xff] 0.0
          %346 = vst [vmem:[%s310 + $0xe0] sm:$0xff] 0.0
          %347 = vst [vmem:[%s310 + $0xe8] sm:$0xff] 0.0
          %348 = vst [vmem:[%s310 + $0xf0] sm:$0xff] 0.0
          %349 = vst [vmem:[%s310 + $0xf8] sm:$0xff] 0.0
        $region56: #{tpu_custom_call.1} parent=35 // pred_fallthru
          _
        %v350 = vld [vmem:[%s310] sm:$0xff]
        %v351 = vld [vmem:[%s310 + $0x8] sm:$0xff]
        %v352 = vld [vmem:[%s310 + $0x10] sm:$0xff]
        %v353 = vld [vmem:[%s310 + $0x18] sm:$0xff]
        %v354 = vld [vmem:[%s310 + $0x20] sm:$0xff]
        %v355 = vld [vmem:[%s310 + $0x28] sm:$0xff]
        %v356 = vld [vmem:[%s310 + $0x30] sm:$0xff]
        %v357 = vld [vmem:[%s310 + $0x38] sm:$0xff]
        %v358 = vld [vmem:[%s310 + $0x40] sm:$0xff]
        %v359 = vld [vmem:[%s310 + $0x48] sm:$0xff]
        %v360 = vld [vmem:[%s310 + $0x50] sm:$0xff]
        %v361 = vld [vmem:[%s310 + $0x58] sm:$0xff]
        %v362 = vld [vmem:[%s310 + $0x60] sm:$0xff]
        %v363 = vld [vmem:[%s310 + $0x68] sm:$0xff]
        %v364 = vld [vmem:[%s310 + $0x70] sm:$0xff]
        %v365 = vld [vmem:[%s310 + $0x78] sm:$0xff]
        %v366 = vld [vmem:[%s310 + $0x80] sm:$0xff]
        %v367 = vld [vmem:[%s310 + $0x88] sm:$0xff]
        %v368 = vld [vmem:[%s310 + $0x90] sm:$0xff]
        %v369 = vld [vmem:[%s310 + $0x98] sm:$0xff]
        %v370 = vld [vmem:[%s310 + $0xa0] sm:$0xff]
        %v371 = vld [vmem:[%s310 + $0xa8] sm:$0xff]
        %v372 = vld [vmem:[%s310 + $0xb0] sm:$0xff]
        %v373 = vld [vmem:[%s310 + $0xb8] sm:$0xff]
        %v374 = vld [vmem:[%s310 + $0xc0] sm:$0xff]
        %v375 = vld [vmem:[%s310 + $0xc8] sm:$0xff]
        %v376 = vld [vmem:[%s310 + $0xd0] sm:$0xff]
        %v377 = vld [vmem:[%s310 + $0xd8] sm:$0xff]
        %v378 = vld [vmem:[%s310 + $0xe0] sm:$0xff]
        %v379 = vld [vmem:[%s310 + $0xe8] sm:$0xff]
        %v380 = vld [vmem:[%s310 + $0xf0] sm:$0xff]
        %v381 = vld [vmem:[%s310 + $0xf8] sm:$0xff]
        %v382 = vld [vmem:[%s270] sm:$0xf]
        %v383 = vld [vmem:[%s270 + $0x4] sm:$0xf]
        %v384 = vld [vmem:[%s270 + $0x8] sm:$0xf]
        %v385 = vld [vmem:[%s270 + $0xc] sm:$0xf]
        %v386 = vld [vmem:[%s270 + $0x10] sm:$0xf]
        %v387 = vld [vmem:[%s270 + $0x14] sm:$0xf]
        %v388 = vld [vmem:[%s270 + $0x18] sm:$0xf]
        %v389 = vld [vmem:[%s270 + $0x1c] sm:$0xf]
        %v390 = vld [vmem:[%s270 + $0x20] sm:$0xf]
        %v391 = vld [vmem:[%s270 + $0x24] sm:$0xf]
        %v392 = vld [vmem:[%s270 + $0x28] sm:$0xf]
        %v393 = vld [vmem:[%s270 + $0x2c] sm:$0xf]
        %v394 = vld [vmem:[%s270 + $0x30] sm:$0xf]
        %v395 = vld [vmem:[%s270 + $0x34] sm:$0xf]
        %v396 = vld [vmem:[%s270 + $0x38] sm:$0xf]
        %v397 = vld [vmem:[%s270 + $0x3c] sm:$0xf]
        %v398 = vld [vmem:[%s270 + $0x40] sm:$0xf]
        %v399 = vld [vmem:[%s270 + $0x44] sm:$0xf]
        %v400 = vld [vmem:[%s270 + $0x48] sm:$0xf]
        %v401 = vld [vmem:[%s270 + $0x4c] sm:$0xf]
        %v402 = vld [vmem:[%s270 + $0x50] sm:$0xf]
        %v403 = vld [vmem:[%s270 + $0x54] sm:$0xf]
        %v404 = vld [vmem:[%s270 + $0x58] sm:$0xf]
        %v405 = vld [vmem:[%s270 + $0x5c] sm:$0xf]
        %v406 = vld [vmem:[%s270 + $0x60] sm:$0xf]
        %v407 = vld [vmem:[%s270 + $0x64] sm:$0xf]
        %v408 = vld [vmem:[%s270 + $0x68] sm:$0xf]
        %v409 = vld [vmem:[%s270 + $0x6c] sm:$0xf]
        %v410 = vld [vmem:[%s270 + $0x70] sm:$0xf]
        %v411 = vld [vmem:[%s270 + $0x74] sm:$0xf]
        %v412 = vld [vmem:[%s270 + $0x78] sm:$0xf]
        %v413 = vld [vmem:[%s270 + $0x7c] sm:$0xf]
        %v414 = vld [vmem:[#allocation5] sm:$0xf]
        %v415 = vld [vmem:[#allocation5 + $0x4] sm:$0xf]
        %v416 = vld [vmem:[#allocation5 + $0x8] sm:$0xf]
        %v417 = vld [vmem:[#allocation5 + $0xc] sm:$0xf]
        %v418 = vld [vmem:[#allocation5 + $0x10] sm:$0xf]
        %v419 = vld [vmem:[#allocation5 + $0x14] sm:$0xf]
        %v420 = vld [vmem:[#allocation5 + $0x18] sm:$0xf]
        %v421 = vld [vmem:[#allocation5 + $0x1c] sm:$0xf]
        %v422 = vld [vmem:[#allocation5 + $0x20] sm:$0xf]
        %v423 = vld [vmem:[#allocation5 + $0x24] sm:$0xf]
        %v424 = vld [vmem:[#allocation5 + $0x28] sm:$0xf]
        %v425 = vld [vmem:[#allocation5 + $0x2c] sm:$0xf]
        %v426 = vld [vmem:[#allocation5 + $0x30] sm:$0xf]
        %v427 = vld [vmem:[#allocation5 + $0x34] sm:$0xf]
        %v428 = vld [vmem:[#allocation5 + $0x38] sm:$0xf]
        %v429 = vld [vmem:[#allocation5 + $0x3c] sm:$0xf]
        %v462 = vunpack.c.l.b16 %v382
        %v463 = vunpack.c.l.b16 %v383
        %v464 = vunpack.c.l.b16 %v384
        %v465 = vunpack.c.l.b16 %v385
        %v466 = vunpack.c.l.b16 %v386
        %v467 = vunpack.c.l.b16 %v387
        %v468 = vunpack.c.l.b16 %v388
        %v469 = vunpack.c.l.b16 %v389
        %v470 = vunpack.c.l.b16 %v390
        %v471 = vunpack.c.l.b16 %v391
        %v472 = vunpack.c.l.b16 %v392
        %v473 = vunpack.c.l.b16 %v393
        %v474 = vunpack.c.l.b16 %v394
        %v475 = vunpack.c.l.b16 %v395
        %v476 = vunpack.c.l.b16 %v396
        %v477 = vunpack.c.l.b16 %v397
        %v478 = vunpack.c.l.b16 %v398
        %v479 = vunpack.c.l.b16 %v399
        %v480 = vunpack.c.l.b16 %v400
        %v481 = vunpack.c.l.b16 %v401
        %v482 = vunpack.c.l.b16 %v402
        %v483 = vunpack.c.l.b16 %v403
        %v484 = vunpack.c.l.b16 %v404
        %v485 = vunpack.c.l.b16 %v405
        %v486 = vunpack.c.l.b16 %v406
        %v487 = vunpack.c.l.b16 %v407
        %v488 = vunpack.c.l.b16 %v408
        %v489 = vunpack.c.l.b16 %v409
        %v490 = vunpack.c.l.b16 %v410
        %v491 = vunpack.c.l.b16 %v411
        %v492 = vunpack.c.l.b16 %v412
        %v493 = vunpack.c.l.b16 %v413
        %v494 = vpack.c.b16 %v463, %v462
        %v495 = vpack.c.b16 %v465, %v464
        %v496 = vpack.c.b16 %v467, %v466
        %v497 = vpack.c.b16 %v469, %v468
        %v498 = vpack.c.b16 %v471, %v470
        %v499 = vpack.c.b16 %v473, %v472
        %v500 = vpack.c.b16 %v475, %v474
        %v501 = vpack.c.b16 %v477, %v476
        %v502 = vpack.c.b16 %v479, %v478
        %v503 = vpack.c.b16 %v481, %v480
        %v504 = vpack.c.b16 %v483, %v482
        %v505 = vpack.c.b16 %v485, %v484
        %v506 = vpack.c.b16 %v487, %v486
        %v507 = vpack.c.b16 %v489, %v488
        %v508 = vpack.c.b16 %v491, %v490
        %v509 = vpack.c.b16 %v493, %v492
        %v542 = vunpack.c.l.b16 %v414
        %v543 = vunpack.c.l.b16 %v415
        %v544 = vunpack.c.l.b16 %v416
        %v545 = vunpack.c.l.b16 %v417
        %v546 = vunpack.c.l.b16 %v418
        %v547 = vunpack.c.l.b16 %v419
        %v548 = vunpack.c.l.b16 %v420
        %v549 = vunpack.c.l.b16 %v421
        %v550 = vunpack.c.l.b16 %v422
        %v551 = vunpack.c.l.b16 %v423
        %v552 = vunpack.c.l.b16 %v424
        %v553 = vunpack.c.l.b16 %v425
        %v554 = vunpack.c.l.b16 %v426
        %v555 = vunpack.c.l.b16 %v427
        %v556 = vunpack.c.l.b16 %v428
        %v557 = vunpack.c.l.b16 %v429
        %v558 = vpack.c.b16 %v543, %v542
        %v559 = vpack.c.b16 %v545, %v544
        %v560 = vpack.c.b16 %v547, %v546
        %v561 = vpack.c.b16 %v549, %v548
        %v562 = vpack.c.b16 %v551, %v550
        %v563 = vpack.c.b16 %v553, %v552
        %v564 = vpack.c.b16 %v555, %v554
        %v565 = vpack.c.b16 %v557, %v556
        %574 = vmatpush.bf16.msra.mxu0 %v565
        %575 = vmatpush.bf16.msra.mxu0 %v564
        %576 = vmatpush.bf16.msra.mxu0 %v563
        %577 = vmatpush.bf16.msra.mxu0 %v562
        %578 = vmatpush.bf16.msra.mxu0 %v561
        %579 = vmatpush.bf16.msra.mxu0 %v560
        %580 = vmatpush.bf16.msra.mxu0 %v559
        %581 = vmatpush.bf16.msra.mxu0 %v558
        %582 = vmatmul.bf16.gmra.mxu0 %v494
        %v583 = vpop.f32.mrf.mxu0
        %v584 = vadd.f32 0.0, %v583
        %v585 = vpop.f32.mrf.mxu0
        %v586 = vadd.f32 0.0, %v585
        %587 = vmatmul.bf16.gmra.mxu0 %v495
        %v588 = vpop.f32.mrf.mxu0
        %v589 = vadd.f32 0.0, %v588
        %v590 = vpop.f32.mrf.mxu0
        %v591 = vadd.f32 0.0, %v590
        %592 = vmatmul.bf16.gmra.mxu0 %v496
        %v593 = vpop.f32.mrf.mxu0
        %v594 = vadd.f32 0.0, %v593
        %v595 = vpop.f32.mrf.mxu0
        %v596 = vadd.f32 0.0, %v595
        %597 = vmatmul.bf16.gmra.mxu0 %v497
        %v598 = vpop.f32.mrf.mxu0
        %v599 = vadd.f32 0.0, %v598
        %v600 = vpop.f32.mrf.mxu0
        %v601 = vadd.f32 0.0, %v600
        %602 = vmatmul.bf16.gmra.mxu0 %v498
        %v603 = vpop.f32.mrf.mxu0
        %v604 = vadd.f32 0.0, %v603
        %v605 = vpop.f32.mrf.mxu0
        %v606 = vadd.f32 0.0, %v605
        %607 = vmatmul.bf16.gmra.mxu0 %v499
        %v608 = vpop.f32.mrf.mxu0
        %v609 = vadd.f32 0.0, %v608
        %v610 = vpop.f32.mrf.mxu0
        %v611 = vadd.f32 0.0, %v610
        %612 = vmatmul.bf16.gmra.mxu0 %v500
        %v613 = vpop.f32.mrf.mxu0
        %v614 = vadd.f32 0.0, %v613
        %v615 = vpop.f32.mrf.mxu0
        %v616 = vadd.f32 0.0, %v615
        %617 = vmatmul.bf16.gmra.mxu0 %v501
        %v618 = vpop.f32.mrf.mxu0
        %v619 = vadd.f32 0.0, %v618
        %v620 = vpop.f32.mrf.mxu0
        %v621 = vadd.f32 0.0, %v620
        %622 = vmatmul.bf16.gmra.mxu0 %v502
        %v623 = vpop.f32.mrf.mxu0
        %v624 = vadd.f32 0.0, %v623
        %v625 = vpop.f32.mrf.mxu0
        %v626 = vadd.f32 0.0, %v625
        %627 = vmatmul.bf16.gmra.mxu0 %v503
        %v628 = vpop.f32.mrf.mxu0
        %v629 = vadd.f32 0.0, %v628
        %v630 = vpop.f32.mrf.mxu0
        %v631 = vadd.f32 0.0, %v630
        %632 = vmatmul.bf16.gmra.mxu0 %v504
        %v633 = vpop.f32.mrf.mxu0
        %v634 = vadd.f32 0.0, %v633
        %v635 = vpop.f32.mrf.mxu0
        %v636 = vadd.f32 0.0, %v635
        %637 = vmatmul.bf16.gmra.mxu0 %v505
        %v638 = vpop.f32.mrf.mxu0
        %v639 = vadd.f32 0.0, %v638
        %v640 = vpop.f32.mrf.mxu0
        %v641 = vadd.f32 0.0, %v640
        %642 = vmatmul.bf16.gmra.mxu0 %v506
        %v643 = vpop.f32.mrf.mxu0
        %v644 = vadd.f32 0.0, %v643
        %v645 = vpop.f32.mrf.mxu0
        %v646 = vadd.f32 0.0, %v645
        %647 = vmatmul.bf16.gmra.mxu0 %v507
        %v648 = vpop.f32.mrf.mxu0
        %v649 = vadd.f32 0.0, %v648
        %v650 = vpop.f32.mrf.mxu0
        %v651 = vadd.f32 0.0, %v650
        %652 = vmatmul.bf16.gmra.mxu0 %v508
        %v653 = vpop.f32.mrf.mxu0
        %v654 = vadd.f32 0.0, %v653
        %v655 = vpop.f32.mrf.mxu0
        %v656 = vadd.f32 0.0, %v655
        %657 = vmatmul.bf16.gmra.mxu0 %v509
        %v658 = vpop.f32.mrf.mxu0
        %v659 = vadd.f32 0.0, %v658
        %v660 = vpop.f32.mrf.mxu0
        %v661 = vadd.f32 0.0, %v660
        %662 = vdwg.mxu0
        %v663 = vadd.f32 %v350, %v584
        %v664 = vadd.f32 %v351, %v586
        %v665 = vadd.f32 %v352, %v589
        %v666 = vadd.f32 %v353, %v591
        %v667 = vadd.f32 %v354, %v594
        %v668 = vadd.f32 %v355, %v596
        %v669 = vadd.f32 %v356, %v599
        %v670 = vadd.f32 %v357, %v601
        %v671 = vadd.f32 %v358, %v604
        %v672 = vadd.f32 %v359, %v606
        %v673 = vadd.f32 %v360, %v609
        %v674 = vadd.f32 %v361, %v611
        %v675 = vadd.f32 %v362, %v614
        %v676 = vadd.f32 %v363, %v616
        %v677 = vadd.f32 %v364, %v619
        %v678 = vadd.f32 %v365, %v621
        %v679 = vadd.f32 %v366, %v624
        %v680 = vadd.f32 %v367, %v626
        %v681 = vadd.f32 %v368, %v629
        %v682 = vadd.f32 %v369, %v631
        %v683 = vadd.f32 %v370, %v634
        %v684 = vadd.f32 %v371, %v636
        %v685 = vadd.f32 %v372, %v639
        %v686 = vadd.f32 %v373, %v641
        %v687 = vadd.f32 %v374, %v644
        %v688 = vadd.f32 %v375, %v646
        %v689 = vadd.f32 %v376, %v649
        %v690 = vadd.f32 %v377, %v651
        %v691 = vadd.f32 %v378, %v654
        %v692 = vadd.f32 %v379, %v656
        %v693 = vadd.f32 %v380, %v659
        %v694 = vadd.f32 %v381, %v661
        %695 = vst [vmem:[%s310] sm:$0xff] %v663
        %696 = vst [vmem:[%s310 + $0x8] sm:$0xff] %v664
        %697 = vst [vmem:[%s310 + $0x10] sm:$0xff] %v665
        %698 = vst [vmem:[%s310 + $0x18] sm:$0xff] %v666
        %699 = vst [vmem:[%s310 + $0x20] sm:$0xff] %v667
        %700 = vst [vmem:[%s310 + $0x28] sm:$0xff] %v668
        %701 = vst [vmem:[%s310 + $0x30] sm:$0xff] %v669
        %702 = vst [vmem:[%s310 + $0x38] sm:$0xff] %v670
        %703 = vst [vmem:[%s310 + $0x40] sm:$0xff] %v671
        %704 = vst [vmem:[%s310 + $0x48] sm:$0xff] %v672
        %705 = vst [vmem:[%s310 + $0x50] sm:$0xff] %v673
        %706 = vst [vmem:[%s310 + $0x58] sm:$0xff] %v674
        %707 = vst [vmem:[%s310 + $0x60] sm:$0xff] %v675
        %708 = vst [vmem:[%s310 + $0x68] sm:$0xff] %v676
        %709 = vst [vmem:[%s310 + $0x70] sm:$0xff] %v677
        %710 = vst [vmem:[%s310 + $0x78] sm:$0xff] %v678
        %711 = vst [vmem:[%s310 + $0x80] sm:$0xff] %v679
        %712 = vst [vmem:[%s310 + $0x88] sm:$0xff] %v680
        %713 = vst [vmem:[%s310 + $0x90] sm:$0xff] %v681
        %714 = vst [vmem:[%s310 + $0x98] sm:$0xff] %v682
        %715 = vst [vmem:[%s310 + $0xa0] sm:$0xff] %v683
        %716 = vst [vmem:[%s310 + $0xa8] sm:$0xff] %v684
        %717 = vst [vmem:[%s310 + $0xb0] sm:$0xff] %v685
        %718 = vst [vmem:[%s310 + $0xb8] sm:$0xff] %v686
        %719 = vst [vmem:[%s310 + $0xc0] sm:$0xff] %v687
        %720 = vst [vmem:[%s310 + $0xc8] sm:$0xff] %v688
        %721 = vst [vmem:[%s310 + $0xd0] sm:$0xff] %v689
        %722 = vst [vmem:[%s310 + $0xd8] sm:$0xff] %v690
        %723 = vst [vmem:[%s310 + $0xe0] sm:$0xff] %v691
        %724 = vst [vmem:[%s310 + $0xe8] sm:$0xff] %v692
        %725 = vst [vmem:[%s310 + $0xf0] sm:$0xff] %v693
        %726 = vst [vmem:[%s310 + $0xf8] sm:$0xff] %v694
        // Predicated region
        $region57: #{tpu_custom_call.1} parent=35 // pred_check
          %p727 = pneg %p314
        $region58: #{tpu_custom_call.1} parent=35 // pred_check_branch
          %729 = sbr.rel (%p727) target = $region60
        $region59: #{tpu_custom_call.1} parent=35 // pred_region
          %v730 = vld [vmem:[%s310] sm:$0xff]
          %v731 = vld [vmem:[%s310 + $0x8] sm:$0xff]
          %v732 = vld [vmem:[%s310 + $0x10] sm:$0xff]
          %v733 = vld [vmem:[%s310 + $0x18] sm:$0xff]
          %v734 = vld [vmem:[%s310 + $0x20] sm:$0xff]
          %v735 = vld [vmem:[%s310 + $0x28] sm:$0xff]
          %v736 = vld [vmem:[%s310 + $0x30] sm:$0xff]
          %v737 = vld [vmem:[%s310 + $0x38] sm:$0xff]
          %v738 = vld [vmem:[%s310 + $0x40] sm:$0xff]
          %v739 = vld [vmem:[%s310 + $0x48] sm:$0xff]
          %v740 = vld [vmem:[%s310 + $0x50] sm:$0xff]
          %v741 = vld [vmem:[%s310 + $0x58] sm:$0xff]
          %v742 = vld [vmem:[%s310 + $0x60] sm:$0xff]
          %v743 = vld [vmem:[%s310 + $0x68] sm:$0xff]
          %v744 = vld [vmem:[%s310 + $0x70] sm:$0xff]
          %v745 = vld [vmem:[%s310 + $0x78] sm:$0xff]
          %v746 = vld [vmem:[%s310 + $0x80] sm:$0xff]
          %v747 = vld [vmem:[%s310 + $0x88] sm:$0xff]
          %v748 = vld [vmem:[%s310 + $0x90] sm:$0xff]
          %v749 = vld [vmem:[%s310 + $0x98] sm:$0xff]
          %v750 = vld [vmem:[%s310 + $0xa0] sm:$0xff]
          %v751 = vld [vmem:[%s310 + $0xa8] sm:$0xff]
          %v752 = vld [vmem:[%s310 + $0xb0] sm:$0xff]
          %v753 = vld [vmem:[%s310 + $0xb8] sm:$0xff]
          %v754 = vld [vmem:[%s310 + $0xc0] sm:$0xff]
          %v755 = vld [vmem:[%s310 + $0xc8] sm:$0xff]
          %v756 = vld [vmem:[%s310 + $0xd0] sm:$0xff]
          %v757 = vld [vmem:[%s310 + $0xd8] sm:$0xff]
          %v758 = vld [vmem:[%s310 + $0xe0] sm:$0xff]
          %v759 = vld [vmem:[%s310 + $0xe8] sm:$0xff]
          %v760 = vld [vmem:[%s310 + $0xf0] sm:$0xff]
          %v761 = vld [vmem:[%s310 + $0xf8] sm:$0xff]
          %v762 = vld [vmem:[#allocation7] sm:$0x1]
          %v764 = vperm.slane %v762, 0
          %v766 = vmul.f32 %v730, %v764
          %v767 = vmul.f32 %v731, %v764
          %v768 = vmul.f32 %v732, %v764
          %v769 = vmul.f32 %v733, %v764
          %v770 = vmul.f32 %v734, %v764
          %v771 = vmul.f32 %v735, %v764
          %v772 = vmul.f32 %v736, %v764
          %v773 = vmul.f32 %v737, %v764
          %v774 = vmul.f32 %v738, %v764
          %v775 = vmul.f32 %v739, %v764
          %v776 = vmul.f32 %v740, %v764
          %v777 = vmul.f32 %v741, %v764
          %v778 = vmul.f32 %v742, %v764
          %v779 = vmul.f32 %v743, %v764
          %v780 = vmul.f32 %v744, %v764
          %v781 = vmul.f32 %v745, %v764
          %v782 = vmul.f32 %v746, %v764
          %v783 = vmul.f32 %v747, %v764
          %v784 = vmul.f32 %v748, %v764
          %v785 = vmul.f32 %v749, %v764
          %v786 = vmul.f32 %v750, %v764
          %v787 = vmul.f32 %v751, %v764
          %v788 = vmul.f32 %v752, %v764
          %v789 = vmul.f32 %v753, %v764
          %v790 = vmul.f32 %v754, %v764
          %v791 = vmul.f32 %v755, %v764
          %v792 = vmul.f32 %v756, %v764
          %v793 = vmul.f32 %v757, %v764
          %v794 = vmul.f32 %v758, %v764
          %v795 = vmul.f32 %v759, %v764
          %v796 = vmul.f32 %v760, %v764
          %v797 = vmul.f32 %v761, %v764
          %v798 = vld [vmem:[#allocation8] sm:$0x1]
          %v800 = vperm.slane %v798, 0
          %v802 = vadd.f32 %v766, %v800
          %v803 = vadd.f32 %v767, %v800
          %v804 = vadd.f32 %v768, %v800
          %v805 = vadd.f32 %v769, %v800
          %v806 = vadd.f32 %v770, %v800
          %v807 = vadd.f32 %v771, %v800
          %v808 = vadd.f32 %v772, %v800
          %v809 = vadd.f32 %v773, %v800
          %v810 = vadd.f32 %v774, %v800
          %v811 = vadd.f32 %v775, %v800
          %v812 = vadd.f32 %v776, %v800
          %v813 = vadd.f32 %v777, %v800
          %v814 = vadd.f32 %v778, %v800
          %v815 = vadd.f32 %v779, %v800
          %v816 = vadd.f32 %v780, %v800
          %v817 = vadd.f32 %v781, %v800
          %v818 = vadd.f32 %v782, %v800
          %v819 = vadd.f32 %v783, %v800
          %v820 = vadd.f32 %v784, %v800
          %v821 = vadd.f32 %v785, %v800
          %v822 = vadd.f32 %v786, %v800
          %v823 = vadd.f32 %v787, %v800
          %v824 = vadd.f32 %v788, %v800
          %v825 = vadd.f32 %v789, %v800
          %v826 = vadd.f32 %v790, %v800
          %v827 = vadd.f32 %v791, %v800
          %v828 = vadd.f32 %v792, %v800
          %v829 = vadd.f32 %v793, %v800
          %v830 = vadd.f32 %v794, %v800
          %v831 = vadd.f32 %v795, %v800
          %v832 = vadd.f32 %v796, %v800
          %v833 = vadd.f32 %v797, %v800
          %v834 = vmax.f32 %v802, 0.0
          %v835 = vmax.f32 %v803, 0.0
          %v836 = vmax.f32 %v804, 0.0
          %v837 = vmax.f32 %v805, 0.0
          %v838 = vmax.f32 %v806, 0.0
          %v839 = vmax.f32 %v807, 0.0
          %v840 = vmax.f32 %v808, 0.0
          %v841 = vmax.f32 %v809, 0.0
          %v842 = vmax.f32 %v810, 0.0
          %v843 = vmax.f32 %v811, 0.0
          %v844 = vmax.f32 %v812, 0.0
          %v845 = vmax.f32 %v813, 0.0
          %v846 = vmax.f32 %v814, 0.0
          %v847 = vmax.f32 %v815, 0.0
          %v848 = vmax.f32 %v816, 0.0
          %v849 = vmax.f32 %v817, 0.0
          %v850 = vmax.f32 %v818, 0.0
          %v851 = vmax.f32 %v819, 0.0
          %v852 = vmax.f32 %v820, 0.0
          %v853 = vmax.f32 %v821, 0.0
          %v854 = vmax.f32 %v822, 0.0
          %v855 = vmax.f32 %v823, 0.0
          %v856 = vmax.f32 %v824, 0.0
          %v857 = vmax.f32 %v825, 0.0
          %v858 = vmax.f32 %v826, 0.0
          %v859 = vmax.f32 %v827, 0.0
          %v860 = vmax.f32 %v828, 0.0
          %v861 = vmax.f32 %v829, 0.0
          %v862 = vmax.f32 %v830, 0.0
          %v863 = vmax.f32 %v831, 0.0
          %v864 = vmax.f32 %v832, 0.0
          %v865 = vmax.f32 %v833, 0.0
          %866 = vst [vmem:[%s310] sm:$0xff] %v834
          %867 = vst [vmem:[%s310 + $0x8] sm:$0xff] %v835
          %868 = vst [vmem:[%s310 + $0x10] sm:$0xff] %v836
          %869 = vst [vmem:[%s310 + $0x18] sm:$0xff] %v837
          %870 = vst [vmem:[%s310 + $0x20] sm:$0xff] %v838
          %871 = vst [vmem:[%s310 + $0x28] sm:$0xff] %v839
          %872 = vst [vmem:[%s310 + $0x30] sm:$0xff] %v840
          %873 = vst [vmem:[%s310 + $0x38] sm:$0xff] %v841
          %874 = vst [vmem:[%s310 + $0x40] sm:$0xff] %v842
          %875 = vst [vmem:[%s310 + $0x48] sm:$0xff] %v843
          %876 = vst [vmem:[%s310 + $0x50] sm:$0xff] %v844
          %877 = vst [vmem:[%s310 + $0x58] sm:$0xff] %v845
          %878 = vst [vmem:[%s310 + $0x60] sm:$0xff] %v846
          %879 = vst [vmem:[%s310 + $0x68] sm:$0xff] %v847
          %880 = vst [vmem:[%s310 + $0x70] sm:$0xff] %v848
          %881 = vst [vmem:[%s310 + $0x78] sm:$0xff] %v849
          %882 = vst [vmem:[%s310 + $0x80] sm:$0xff] %v850
          %883 = vst [vmem:[%s310 + $0x88] sm:$0xff] %v851
          %884 = vst [vmem:[%s310 + $0x90] sm:$0xff] %v852
          %885 = vst [vmem:[%s310 + $0x98] sm:$0xff] %v853
          %886 = vst [vmem:[%s310 + $0xa0] sm:$0xff] %v854
          %887 = vst [vmem:[%s310 + $0xa8] sm:$0xff] %v855
          %888 = vst [vmem:[%s310 + $0xb0] sm:$0xff] %v856
          %889 = vst [vmem:[%s310 + $0xb8] sm:$0xff] %v857
          %890 = vst [vmem:[%s310 + $0xc0] sm:$0xff] %v858
          %891 = vst [vmem:[%s310 + $0xc8] sm:$0xff] %v859
          %892 = vst [vmem:[%s310 + $0xd0] sm:$0xff] %v860
          %893 = vst [vmem:[%s310 + $0xd8] sm:$0xff] %v861
          %894 = vst [vmem:[%s310 + $0xe0] sm:$0xff] %v862
          %895 = vst [vmem:[%s310 + $0xe8] sm:$0xff] %v863
          %896 = vst [vmem:[%s310 + $0xf0] sm:$0xff] %v864
          %897 = vst [vmem:[%s310 + $0xf8] sm:$0xff] %v865
        $region60: #{tpu_custom_call.1} parent=35 // pred_fallthru
          _
        %s898 = sand.u32 %s160, 1
        %s899 = scalar_lea.sflag [#allocation4], %s898
        %s900 = sand.u32 %s160, 1
        %s901 = smul.addr %s900, 256
        %s902 = scalar_lea.vmem [#allocation10], %s901
        // Predicated region
        $region61: #{tpu_custom_call.1} parent=35 // pred_check
          %p903 = pneg %p170
        $region62: #{tpu_custom_call.1} parent=35 // pred_check_branch
          %905 = sbr.rel (%p903) target = $region64
        $region63: #{tpu_custom_call.1} parent=35 // pred_region
          %s906 = smul.u32 32, %s28
          %908 = vsyncadd %s899, 0
          %s909 = sadd.s32 %s29, %s906
          %s910 = smul.addr %s909, 8
          %s911 = scalar_lea.hbm %s4, %s910
          %s912 = sshll.u32 %s902, 4
          %s913 = int_to_ptr.vmem [resolvable:$true] %s912
          %s914 = sshll.u32 %s911, 4
          %s915 = int_to_ptr.hbm [resolvable:$true] %s914
          %920 = dma.vmem_to_hbm [thread:$0]  %s913, 4096, %s915, %s899, 128, 128, 8
        $region64: #{tpu_custom_call.1} parent=35 // pred_fallthru
          _
      $region36: #{tpu_custom_call.1} parent=5 // pred_fallthru
        _
      %p921 = scmp.le.s32.totalorder 2, %s18
      // Predicated region
      $region65: #{tpu_custom_call.1} parent=5 // pred_check
        %p922 = pneg %p921
      $region66: #{tpu_custom_call.1} parent=5 // pred_check_branch
        %924 = sbr.rel (%p922) target = $region68
      $region67: #{tpu_custom_call.1} parent=5 // pred_region
        %s925 = ssub.s32 %s18, 2
        // Predicated region
        $region69: #{tpu_custom_call.1} parent=67 // pred_check
          %p926 = pneg %p176
        $region70: #{tpu_custom_call.1} parent=67 // pred_check_branch
          %928 = sbr.rel (%p926) target = $region72
        $region71: #{tpu_custom_call.1} parent=67 // pred_region
          %s929 = sand.u32 %s161, 1
          %s930 = scalar_lea.sflag [#allocation4], %s929
          %s931 = sand.u32 %s161, 1
          %s932 = smul.addr %s931, 256
          %s933 = scalar_lea.vmem [#allocation10], %s932
          %935 = dma.done %s930, 4096
        $region72: #{tpu_custom_call.1} parent=67 // pred_fallthru
          _
      $region68: #{tpu_custom_call.1} parent=5 // pred_fallthru
        _
    $region6: #{tpu_custom_call.1} parent=1 // loop_footer
      %s22 = sadd.s32 1, %s18
    $region7: #{tpu_custom_call.1} parent=1 // loop_footer_branch
      %17 = sbr.rel target = $region3
    $region8: #{tpu_custom_call.1} parent=1 // loop_exit
      _
    %936 = vsyncpa [#allocation3], 1
    %s937 = scalar_lea.sflag [#allocation3], 1
    %938 = vsyncpa %s937, 1
    %939 = vsyncpa [#allocation6], 1
    %940 = vsyncpa [#allocation9], 1
    %941 = vsyncpa [#allocation4], 1
    %s942 = scalar_lea.sflag [#allocation4], 1
    %943 = vsyncpa %s942, 1

</llo_original>
